<compile_context>
chip_gen: v5e
topology: v5e:2x2
jax: 0.10.0
libtpu: 0.0.40
codegen_flags: <defaults>
</compile_context>

<pallas_src>
import jax
import jax.numpy as jnp
from jax.experimental import pallas as pl
from jax.experimental.pallas import tpu as pltpu


def _time_embedding_kernel(x_ref, w1_ref, b1_ref, w2_ref, b2_ref, o_ref, h_ref):
    """Grid = (batch tiles [parallel], N halves [parallel], N tiles [arbitrary])."""
    k = pl.program_id(2)

    # h = SiLU(x @ W1 + b1) depends only on the batch tile; compute it once at
    # the start of each N sweep and keep it resident (bf16) in VMEM scratch.
    @pl.when(k == 0)
    def _():
        h = jnp.dot(x_ref[...], w1_ref[...],
                    preferred_element_type=jnp.float32) + b1_ref[...]
        # SiLU math in f32 (v5e has no bf16 VPU/EUP); exact sigmoid (exp rides
        # the EUP slot). Runs once per batch tile, so VALU cost is negligible.
        h_ref[...] = (h * jax.nn.sigmoid(h)).astype(h_ref.dtype)

    # One (d4, tn) slab of W2 per grid step; bf16 MXU inputs, f32 accumulate.
    y = jnp.dot(h_ref[...], w2_ref[...],
                preferred_element_type=jnp.float32) + b2_ref[...]
    o_ref[...] = y.astype(o_ref.dtype)


def _round_up(a, m):
    return (a + m - 1) // m * m


def _vmem_capacity_bytes():
    try:
        return int(pltpu.get_tpu_info().vmem_capacity_bytes)
    except Exception:
        return 64 * 2**20  # conservative default (v7x per-TC VMEM)


def time_embedding(x, w1, b1, w2, b2, *, compute_dtype=jnp.bfloat16):
    """y = SiLU(x @ w1 + b1) @ w2 + b2, weights in (in, out) layout."""
    B, d = x.shape
    d4 = 4 * d
    assert w1.shape == (d, d4) and b1.shape == (d4,)
    assert w2.shape == (d4, d4) and b2.shape == (d4,)
    out_dtype = x.dtype
    itm = jnp.dtype(compute_dtype).itemsize
    out_itm = jnp.dtype(out_dtype).itemsize

    # Batch tiling: pad to a multiple of 16 rows (bf16 packs 16 rows/sublane
    # group); prefer nb == 1 so W2 is streamed from HBM exactly once.
    tb = min(_round_up(max(B, 16), 16), 256)
    B_pad = _round_up(B, tb)
    if B_pad != B:
        x = jnp.pad(x, ((0, B_pad - B), (0, 0)))
    nb = B_pad // tb

    # Per-chip VMEM budget with headroom (v7x: ~52 MiB of 64; v6e/v5e: 100 MiB).
    vmem_cap = _vmem_capacity_bytes()
    budget = min(max(vmem_cap - 12 * 2**20, 16 * 2**20), 100 * 2**20)

    def footprint(tn):
        return (
            tb * d * itm             # x              (single-buffered when nb==1)
            + d * d4 * itm           # W1             (single-buffered)
            + d4 * 4                 # b1             (single-buffered, f32)
            + 2 * d4 * tn * itm      # W2 slab        (double-buffered)
            + 2 * tn * 4             # b2 slab        (double-buffered, f32)
            + 2 * tb * tn * out_itm  # output tile    (double-buffered)
            + tb * d4 * itm          # bf16 SiLU hidden scratch
        )

    # N tiling: largest lane-aligned W2 slab that fits the budget
    # (tn == d4, a single grid step, for common diffusion widths).
    if d4 % 128 != 0:
        tn = d4  # lane-unaligned fallback (masked stores) — only tiny widths
    else:
        cands = [c for c in range(d4, 127, -128) if d4 % c == 0]
        tn = cands[-1]  # fallback: 128
        for c in cands:
            if footprint(c) <= budget:
                tn = c
                break
    nn = d4 // tn

    # Split the N axis into a leading parallel factor of 2 when possible so
    # v7x's second TensorCore streams the other half of W2 (h is recomputed
    # per sweep; the first GEMM is tiny).
    if nn >= 2 and nn % 2 == 0:
        np_, nk = 2, nn // 2
    else:
        np_, nk = 1, nn

    # bf16 MXU operands (halves dominant W2 traffic); biases stay f32 and are
    # added after f32 accumulation.
    x_c = x.astype(compute_dtype)
    w1_c = w1.astype(compute_dtype)
    w2_c = w2.astype(compute_dtype)
    b1_2d = b1.reshape(1, d4).astype(jnp.float32)
    b2_2d = b2.reshape(1, d4).astype(jnp.float32)

    # Advisory cost (includes W1/W2 re-reads when nb > 1).
    cost = pl.CostEstimate(
        flops=2 * B_pad * d * d4 + 2 * B_pad * d4 * d4,
        transcendentals=B_pad * d4,
        bytes_accessed=(B_pad * d + nb * d * d4 + nb * d4 * d4) * itm
        + nb * 2 * d4 * 4
        + B_pad * d4 * out_itm,
    )

    vmem_limit = int(min(budget,
                         max(16 * 2**20, int(1.3 * footprint(tn)) + 2 * 2**20)))

    invariant = pl.Buffered(1)                 # truly grid-invariant blocks
    x_mode = pl.Buffered(1) if nb == 1 else None

    grid_spec = pltpu.PrefetchScalarGridSpec(
        num_scalar_prefetch=0,
        grid=(nb, np_, nk),
        in_specs=[
            pl.BlockSpec((tb, d), lambda i, p, k: (i, 0),
                         pipeline_mode=x_mode),                  # x
            pl.BlockSpec((d, d4), lambda i, p, k: (0, 0),
                         pipeline_mode=invariant),               # W1 (resident)
            pl.BlockSpec((1, d4), lambda i, p, k: (0, 0),
                         pipeline_mode=invariant),               # b1
            pl.BlockSpec((d4, tn), lambda i, p, k: (0, p * nk + k)),  # W2 stream
            pl.BlockSpec((1, tn), lambda i, p, k: (0, p * nk + k)),   # b2
        ],
        out_specs=pl.BlockSpec((tb, tn), lambda i, p, k: (i, p * nk + k)),
        scratch_shapes=[pltpu.VMEM((tb, d4), compute_dtype)],    # bf16 SiLU hidden
    )

    out = pl.pallas_call(
        _time_embedding_kernel,
        out_shape=jax.ShapeDtypeStruct((B_pad, d4), out_dtype),
        grid_spec=grid_spec,
        cost_estimate=cost,
        compiler_params=pltpu.CompilerParams(
            # Batch tiles and N halves are independent -> megacore-shardable;
            # the innermost N axis reuses the h scratch, so it stays sequential.
            dimension_semantics=("parallel", "parallel", "arbitrary"),
            vmem_limit_bytes=vmem_limit,
        ),
    )(x_c, w1_c, b1_2d, w2_c, b2_2d)

    return out[:B] if B_pad != B else out


def _ref(x, w1, b1, w2, b2):
    h = x @ w1 + b1
    h = h * jax.nn.sigmoid(h)
    return h @ w2 + b2


if __name__ == "__main__":
    B = 2
    d_embd = 32                      # hidden = 4 * d_embd = 128 (lane-aligned)
    d4 = 4 * d_embd

    key = jax.random.PRNGKey(0)
    kx, k1, kb1, k2, kb2 = jax.random.split(key, 5)

    x = jax.random.normal(kx, (B, d_embd), dtype=jnp.float32)

    # Deterministic parameter init (PyTorch-style uniform +/- 1/sqrt(fan_in)).
    lim1 = 1.0 / jnp.sqrt(d_embd)
    w1 = jax.random.uniform(k1, (d_embd, d4), jnp.float32, -lim1, lim1)
    b1 = jax.random.uniform(kb1, (d4,), jnp.float32, -lim1, lim1)
    lim2 = 1.0 / jnp.sqrt(d4)
    w2 = jax.random.uniform(k2, (d4, d4), jnp.float32, -lim2, lim2)
    b2 = jax.random.uniform(kb2, (d4,), jnp.float32, -lim2, lim2)

    out = time_embedding(x, w1, b1, w2, b2)
    out = jax.block_until_ready(out)

    ref = _ref(x, w1, b1, w2, b2)
    assert out.shape == (B, d4)
    # bf16 MXU operands + exact sigmoid -> mixed-precision tolerance.
    assert jnp.allclose(out, ref, atol=2e-2, rtol=2e-2), "mismatch vs reference"

    print("KERNEL_OK")
</pallas_src>

<mosaic_0001>
module attributes {stable_mosaic.version = 11 : i64} {
  func.func @_time_embedding_kernel(%arg0: i32, %arg1: i32, %arg2: i32, %arg3: memref<16x32xbf16, #tpu.memory_space<vmem>>, %arg4: memref<32x128xbf16, #tpu.memory_space<vmem>>, %arg5: memref<1x128xf32, #tpu.memory_space<vmem>>, %arg6: memref<128x128xbf16, #tpu.memory_space<vmem>>, %arg7: memref<1x128xf32, #tpu.memory_space<vmem>>, %arg8: memref<16x128xf32, #tpu.memory_space<vmem>>, %arg9: memref<16x128xbf16, #tpu.memory_space<vmem>>) attributes {dimension_semantics = [#tpu.dimension_semantics<parallel>, #tpu.dimension_semantics<parallel>, #tpu.dimension_semantics<arbitrary>], iteration_bounds = array<i64: 1, 1, 1>, scalar_prefetch = 0 : i64, scratch_operands = 1 : i64, tpu.core_type = #tpu.core_type<tc>, window_params = [{pipeline_mode = #tpu.pipeline_mode<synchronous>, transform_indices = @transform_0, window_bounds = array<i64: 16, 32>}, {pipeline_mode = #tpu.pipeline_mode<synchronous>, transform_indices = @transform_1, window_bounds = array<i64: 32, 128>}, {pipeline_mode = #tpu.pipeline_mode<synchronous>, transform_indices = @transform_2, window_bounds = array<i64: 1, 128>}, {transform_indices = @transform_3, window_bounds = array<i64: 128, 128>}, {transform_indices = @transform_4, window_bounds = array<i64: 1, 128>}, {transform_indices = @transform_5, window_bounds = array<i64: 16, 128>}]} {
    %c0_i32 = arith.constant 0 : i32
    %0 = arith.cmpi eq, %arg2, %c0_i32 : i32
    %1 = arith.extui %0 : i1 to i32
    %c0_i32_0 = arith.constant 0 : i32
    %2 = arith.cmpi ne, %1, %c0_i32_0 : i32
    scf.if %2 {
      %c0_8 = arith.constant 0 : index
      %c0_9 = arith.constant 0 : index
      %10 = vector.load %arg3[%c0_8, %c0_9] : memref<16x32xbf16, #tpu.memory_space<vmem>>, vector<16x32xbf16>
      %c0_10 = arith.constant 0 : index
      %c0_11 = arith.constant 0 : index
      %11 = vector.load %arg4[%c0_10, %c0_11] : memref<32x128xbf16, #tpu.memory_space<vmem>>, vector<32x128xbf16>
      %cst_12 = arith.constant dense<0.000000e+00> : vector<16x128xf32>
      %12 = tpu.matmul %10, %11, %cst_12 {dimension_numbers = #tpu.dot_dimension_numbers<[1], [0], [0], [1], [0, 0, 1, 1], [], []>} : vector<16x32xbf16>, vector<32x128xbf16>, vector<16x128xf32> -> vector<16x128xf32>
      %c0_13 = arith.constant 0 : index
      %c0_14 = arith.constant 0 : index
      %13 = vector.load %arg5[%c0_13, %c0_14] : memref<1x128xf32, #tpu.memory_space<vmem>>, vector<1x128xf32>
      %14 = vector.broadcast %13 : vector<1x128xf32> to vector<16x128xf32>
      %15 = arith.addf %12, %14 : vector<16x128xf32>
      %16 = arith.negf %15 : vector<16x128xf32>
      %17 = math.exp %16 : vector<16x128xf32>
      %cst_15 = arith.constant 1.000000e+00 : f32
      %18 = vector.broadcast %cst_15 : f32 to vector<16x128xf32>
      %19 = arith.addf %18, %17 : vector<16x128xf32>
      %20 = arith.divf %18, %19 : vector<16x128xf32>
      %21 = arith.mulf %15, %20 : vector<16x128xf32>
      %22 = arith.truncf %21 : vector<16x128xf32> to vector<16x128xbf16>
      %c0_16 = arith.constant 0 : index
      %c0_17 = arith.constant 0 : index
      %23 = vector.load %arg9[%c0_16, %c0_17] : memref<16x128xbf16, #tpu.memory_space<vmem>>, vector<16x128xbf16>
      tpu.vector_store %arg9[%c0_16, %c0_17], %22 {strides = array<i32>} : memref<16x128xbf16, #tpu.memory_space<vmem>>, vector<16x128xbf16>,
    } else {
    }
    %c0 = arith.constant 0 : index
    %c0_1 = arith.constant 0 : index
    %3 = vector.load %arg9[%c0, %c0_1] : memref<16x128xbf16, #tpu.memory_space<vmem>>, vector<16x128xbf16>
    %c0_2 = arith.constant 0 : index
    %c0_3 = arith.constant 0 : index
    %4 = vector.load %arg6[%c0_2, %c0_3] : memref<128x128xbf16, #tpu.memory_space<vmem>>, vector<128x128xbf16>
    %cst = arith.constant dense<0.000000e+00> : vector<16x128xf32>
    %5 = tpu.matmul %3, %4, %cst {dimension_numbers = #tpu.dot_dimension_numbers<[1], [0], [0], [1], [0, 0, 1, 1], [], []>} : vector<16x128xbf16>, vector<128x128xbf16>, vector<16x128xf32> -> vector<16x128xf32>
    %c0_4 = arith.constant 0 : index
    %c0_5 = arith.constant 0 : index
    %6 = vector.load %arg7[%c0_4, %c0_5] : memref<1x128xf32, #tpu.memory_space<vmem>>, vector<1x128xf32>
    %7 = vector.broadcast %6 : vector<1x128xf32> to vector<16x128xf32>
    %8 = arith.addf %5, %7 : vector<16x128xf32>
    %c0_6 = arith.constant 0 : index
    %c0_7 = arith.constant 0 : index
    %9 = vector.load %arg8[%c0_6, %c0_7] : memref<16x128xf32, #tpu.memory_space<vmem>>, vector<16x128xf32>
    tpu.vector_store %arg8[%c0_6, %c0_7], %8 {strides = array<i32>} : memref<16x128xf32, #tpu.memory_space<vmem>>, vector<16x128xf32>,
    return
  }
  func.func @transform_0(%arg0: i32, %arg1: i32, %arg2: i32) -> (i32, i32) {
    %c0_i32 = arith.constant 0 : i32
    %c0_i32_0 = arith.constant 0 : i32
    return %arg0, %c0_i32 : i32, i32
  }
  func.func @transform_1(%arg0: i32, %arg1: i32, %arg2: i32) -> (i32, i32) {
    %c0_i32 = arith.constant 0 : i32
    %c0_i32_0 = arith.constant 0 : i32
    %c0_i32_1 = arith.constant 0 : i32
    return %c0_i32, %c0_i32_0 : i32, i32
  }
  func.func @transform_2(%arg0: i32, %arg1: i32, %arg2: i32) -> (i32, i32) {
    %c0_i32 = arith.constant 0 : i32
    %c0_i32_0 = arith.constant 0 : i32
    %c0_i32_1 = arith.constant 0 : i32
    return %c0_i32, %c0_i32_0 : i32, i32
  }
  func.func @transform_3(%arg0: i32, %arg1: i32, %arg2: i32) -> (i32, i32) {
    %c1_i32 = arith.constant 1 : i32
    %0 = arith.muli %arg1, %c1_i32 : i32
    %1 = arith.addi %0, %arg2 : i32
    %c0_i32 = arith.constant 0 : i32
    %c0_i32_0 = arith.constant 0 : i32
    return %c0_i32, %1 : i32, i32
  }
  func.func @transform_4(%arg0: i32, %arg1: i32, %arg2: i32) -> (i32, i32) {
    %c1_i32 = arith.constant 1 : i32
    %0 = arith.muli %arg1, %c1_i32 : i32
    %1 = arith.addi %0, %arg2 : i32
    %c0_i32 = arith.constant 0 : i32
    %c0_i32_0 = arith.constant 0 : i32
    return %c0_i32, %1 : i32, i32
  }
  func.func @transform_5(%arg0: i32, %arg1: i32, %arg2: i32) -> (i32, i32) {
    %c1_i32 = arith.constant 1 : i32
    %0 = arith.muli %arg1, %c1_i32 : i32
    %1 = arith.addi %0, %arg2 : i32
    %c0_i32 = arith.constant 0 : i32
    return %arg0, %1 : i32, i32
  }
}

</mosaic_0001>

<llo_original>
// kernel: tpu_custom_call.1
$region0: #{tpu_custom_call.1}
  #allocation0 [shape = 'u32[]', space=smem, size = 0x4, offset = 0x4, fixed_abs, tag = 'smem constant byte address 0x4 - core index']
  #allocation1 [shape = 'u32[72,128]{1,0:T(1,128)}', space=vmem, size = 0x9000, scoped, tag = 'internal scratch']
  #allocation2 [shape = 'bf16[16,128]{1,0:T(8,128)(2,1)}', space=vmem, size = 0x1000, scoped, tag = 'scratch operand']
  %s0 = inlined_call_operand.hbm [shape: bf16[16,32], index: 0, kind: input, shape index: {}]
  %s1 = inlined_call_operand.hbm [shape: bf16[32,128], index: 1, kind: input, shape index: {}]
  %s2 = inlined_call_operand.vmem [shape: f32[1,128], index: 2, kind: input, shape index: {}]
  %s3 = inlined_call_operand.hbm [shape: bf16[128,128], index: 3, kind: input, shape index: {}]
  %s4 = inlined_call_operand.vmem [shape: f32[1,128], index: 4, kind: input, shape index: {}]
  %s5 = inlined_call_operand.hbm [shape: f32[16,128], index: 5, kind: output, shape index: {}]
  %s6 = sld [smem:[#allocation0]]
  $region46: #{tpu_custom_call.1} parent=0
    _
  %s8 = ssub.s32 1, %s6
  %s9 = scalar_select 0, %s8, %s6
  $region1: #{tpu_custom_call.1} parent=0
    #allocation3 [shape = 'u8[4096]{0}', space=vmem, size = 0x1000, scoped, tag = 'input window, operand 0, single buffered']
    #allocation4 [shape = 's32[1]{0}', space=sflag, size = 0x4, scoped, tag = 'scoped memory for tpu_custom_call.1']
    #allocation5 [shape = 's32[1]{0}', space=sflag, size = 0x4, scoped, tag = 'scoped memory for tpu_custom_call.1']
    #allocation6 [shape = 'u8[8192]{0}', space=vmem, size = 0x2000, scoped, tag = 'input window, operand 1, single buffered']
    #allocation7 [shape = 's32[1]{0}', space=sflag, size = 0x4, scoped, tag = 'scoped memory for tpu_custom_call.1']
    #allocation8 [shape = 'u8[32768]{0}', space=vmem, size = 0x8000, scoped, tag = 'input window, operand 3, single buffered']
    #allocation9 [shape = 'u8[8192]{0}', space=vmem, size = 0x2000, scoped, tag = 'output window, operand 0, single buffered']
    %10 = vsyncpa [#allocation4], 0
    %11 = vsyncpa [#allocation7], 0
    %12 = vsyncpa [#allocation5], 0
    // Predicated region
    $region2: #{tpu_custom_call.1} parent=1 // pred_check
      _
    $region3: #{tpu_custom_call.1} parent=1 // pred_check_branch
      %14 = sbr.rel (0) target = $region5
    $region4: #{tpu_custom_call.1} parent=1 // pred_region
      %16 = vsyncadd [#allocation4], 0
      %s17 = sshll.u32 %s0, 4
      %s18 = int_to_ptr.hbm [resolvable:$true] %s17
      %s19 = sshll.u32 [#allocation3], 4
      %s20 = int_to_ptr.vmem [resolvable:$true] %s19
      %25 = dma.hbm_to_vmem [thread:$0]  %s18, 128, %s20, [#allocation4], 64, 64, 4
    $region5: #{tpu_custom_call.1} parent=1 // pred_fallthru
      _
    // Predicated region
    $region6: #{tpu_custom_call.1} parent=1 // pred_check
      _
    $region7: #{tpu_custom_call.1} parent=1 // pred_check_branch
      %27 = sbr.rel (0) target = $region9
    $region8: #{tpu_custom_call.1} parent=1 // pred_region
      %29 = vsyncadd [#allocation7], 0
      %s30 = sshll.u32 %s1, 4
      %s31 = int_to_ptr.hbm [resolvable:$true] %s30
      %s32 = sshll.u32 [#allocation6], 4
      %s33 = int_to_ptr.vmem [resolvable:$true] %s32
      %38 = dma.hbm_to_vmem [thread:$0]  %s31, 256, %s33, [#allocation7], 64, 64, 4
    $region9: #{tpu_custom_call.1} parent=1 // pred_fallthru
      _
    // Predicated region
    $region10: #{tpu_custom_call.1} parent=1 // pred_check
      _
    $region11: #{tpu_custom_call.1} parent=1 // pred_check_branch
      %40 = sbr.rel (0) target = $region13
    $region12: #{tpu_custom_call.1} parent=1 // pred_region
      _
    $region13: #{tpu_custom_call.1} parent=1 // pred_fallthru
      _
    // Predicated region
    $region14: #{tpu_custom_call.1} parent=1 // pred_check
      _
    $region15: #{tpu_custom_call.1} parent=1 // pred_check_branch
      %42 = sbr.rel (0) target = $region17
    $region16: #{tpu_custom_call.1} parent=1 // pred_region
      %s43 = sadd.s32 0, 0
      %45 = vsyncadd [#allocation7], 0
      %s46 = smul.addr %s43, 4
      %s47 = scalar_lea.hbm %s3, %s46
      %s48 = sshll.u32 %s47, 4
      %s49 = int_to_ptr.hbm [resolvable:$true] %s48
      %s50 = sshll.u32 [#allocation8], 4
      %s51 = int_to_ptr.vmem [resolvable:$true] %s50
      %56 = dma.hbm_to_vmem [thread:$0]  %s49, 1024, %s51, [#allocation7], 64, 64, 4
    $region17: #{tpu_custom_call.1} parent=1 // pred_fallthru
      _
    // Predicated region
    $region18: #{tpu_custom_call.1} parent=1 // pred_check
      _
    $region19: #{tpu_custom_call.1} parent=1 // pred_check_branch
      %58 = sbr.rel (0) target = $region21
    $region20: #{tpu_custom_call.1} parent=1 // pred_region
      %s59 = sadd.s32 0, 0
      %p60 = scmp.lt.s32.totalorder %s59, 0
      %s61 = scalar_select %p60, %s59, 0
      %s62 = scalar_lea.vmem %s4, %s61
      %s63 = sadd.s32 0, 0
    $region21: #{tpu_custom_call.1} parent=1 // pred_fallthru
      _
    // Predicated region
    $region22: #{tpu_custom_call.1} parent=1 // pred_check
      _
    $region23: #{tpu_custom_call.1} parent=1 // pred_check_branch
      %65 = sbr.rel (0) target = $region25
    $region24: #{tpu_custom_call.1} parent=1 // pred_region
      %67 = dma.done [#allocation4], 128
    $region25: #{tpu_custom_call.1} parent=1 // pred_fallthru
      _
    // Predicated region
    $region26: #{tpu_custom_call.1} parent=1 // pred_check
      _
    $region27: #{tpu_custom_call.1} parent=1 // pred_check_branch
      %69 = sbr.rel (0) target = $region29
    $region28: #{tpu_custom_call.1} parent=1 // pred_region
      %71 = dma.done [#allocation7], 256
    $region29: #{tpu_custom_call.1} parent=1 // pred_fallthru
      _
    // Predicated region
    $region30: #{tpu_custom_call.1} parent=1 // pred_check
      _
    $region31: #{tpu_custom_call.1} parent=1 // pred_check_branch
      %73 = sbr.rel (0) target = $region33
    $region32: #{tpu_custom_call.1} parent=1 // pred_region
      %75 = dma.done [#allocation7], 1024
    $region33: #{tpu_custom_call.1} parent=1 // pred_fallthru
      _
    %s76 = sadd.s32 0, 0
    %p77 = scmp.lt.s32.totalorder %s76, 0
    %s78 = scalar_select %p77, %s76, 0
    %s79 = scalar_lea.vmem %s4, %s78
    %s80 = sadd.s32 0, 0
    %s81 = sadd.s32 0, 0
    %p82 = scmp.lt.s32.totalorder %s81, 0
    %s83 = scalar_select %p82, %s81, 0
    %s84 = scalar_lea.vmem %s4, %s83
    %s85 = sadd.s32 0, 0
    %s86 = sadd.s32 0, 0
    %p88 = scmp.eq.s32.totalorder 0, 0
    // Predicated region
    $region34: #{tpu_custom_call.1} parent=1 // pred_check
      %p89 = pneg %p88
    $region35: #{tpu_custom_call.1} parent=1 // pred_check_branch
      %91 = sbr.rel (%p89) target = $region37
    $region36: #{tpu_custom_call.1} parent=1 // pred_region
      %v92 = vld [vmem:[#allocation3] sm:$0xf]
      %v93 = vld [vmem:[#allocation3 + $0x4] sm:$0xf]
      %v94 = vld [vmem:[#allocation6] sm:$0xf]
      %v95 = vld [vmem:[#allocation6 + $0x4] sm:$0xf]
      %v96 = vld [vmem:[#allocation6 + $0x8] sm:$0xf]
      %v97 = vld [vmem:[#allocation6 + $0xc] sm:$0xf]
      %v98 = vld [vmem:[%s2] sm:$0x1]
      %v100 = vperm.slane %v98, 0
      %v104 = vunpack.c.l.b16 %v92
      %v105 = vunpack.c.l.b16 %v93
      %v106 = vpack.c.b16 %v105, %v104
      %v111 = vunpack.c.l.b16 %v94
      %v112 = vunpack.c.l.b16 %v95
      %v113 = vunpack.c.l.b16 %v96
      %v114 = vunpack.c.l.b16 %v97
      %v115 = vpack.c.b16 %v112, %v111
      %v116 = vpack.c.b16 %v114, %v113
      %vm119 = vcmask 261120
      %v121 = vsel %vm119, %v106, 0
      %123 = vmatpush.bf16.msra.mxu0 0
      %124 = vmatpush.bf16.msra.mxu0 0
      %125 = vmatpush.bf16.msra.mxu0 0
      %126 = vmatpush.bf16.msra.mxu0 0
      %127 = vmatpush.bf16.msra.mxu0 0
      %128 = vmatpush.bf16.msra.mxu0 0
      %129 = vmatpush.bf16.msra.mxu0 %v116
      %130 = vmatpush.bf16.msra.mxu0 %v115
      %131 = vmatmul.bf16.gmra.mxu0 %v121
      %v132 = vpop.f32.mrf.mxu0
      %v133 = vadd.f32 %v100, %v132
      %v134 = vpop.f32.mrf.mxu0
      %v135 = vadd.f32 %v100, %v134
      %136 = vdwg.mxu0
      %v137 = vxor.u32 %v133, 2147483648
      %v138 = vxor.u32 %v135, 2147483648
      %v139 = vmul.f32 %v137, 1.442695
      %v140 = vpow.pop %v139
      %v141 = vmul.f32 %v138, 1.442695
      %v142 = vpow.pop %v141
      %v143 = vadd.f32 %v140, 1.0
      %v144 = vadd.f32 %v142, 1.0
      %v145 = vrcp.pop %v143
      %v146 = vmul.f32 %v143, %v145
      %v147 = vsub.f32 1.0, %v146
      %v148 = vmul.f32 %v145, %v147
      %v149 = vadd.f32 %v145, %v148
      %vm150 = vweird.f32 %v143
      %vm151 = vweird.f32 %v145
      %vm152 = vmor %vm150, %vm151
      %v153 = vsel %vm152, %v145, %v149
      %v154 = vand.u32 2147483647, %v143
      %vm155 = vcmp.eq.f32.partialorder %v154, 8.507059e+37
      %v156 = vand.u32 %v143, 2147483648
      %v157 = vor.u32 1.1754944e-38, %v156
      %v158 = vsel %vm155, %v157, %v153
      %v159 = vmul.f32 1.0, %v158
      %v160 = vrcp.pop %v144
      %v161 = vmul.f32 %v144, %v160
      %v162 = vsub.f32 1.0, %v161
      %v163 = vmul.f32 %v160, %v162
      %v164 = vadd.f32 %v160, %v163
      %vm165 = vweird.f32 %v144
      %vm166 = vweird.f32 %v160
      %vm167 = vmor %vm165, %vm166
      %v168 = vsel %vm167, %v160, %v164
      %v169 = vand.u32 2147483647, %v144
      %vm170 = vcmp.eq.f32.partialorder %v169, 8.507059e+37
      %v171 = vand.u32 %v144, 2147483648
      %v172 = vor.u32 1.1754944e-38, %v171
      %v173 = vsel %vm170, %v172, %v168
      %v174 = vmul.f32 1.0, %v173
      %v175 = vmul.f32 %v133, %v159
      %v176 = vmul.f32 %v135, %v174
      %v177 = vpack.c.bf16 %v175, %v175
      %v178 = vpack.c.bf16 %v176, %v176
      %179 = vst [vmem:[#allocation2] sm:$0xf] %v177
      %180 = vst [vmem:[#allocation2 + $0x4] sm:$0xf] %v178
    $region37: #{tpu_custom_call.1} parent=1 // pred_fallthru
      _
    %v181 = vld [vmem:[#allocation2] sm:$0xf]
    %v182 = vld [vmem:[#allocation2 + $0x4] sm:$0xf]
    %v183 = vld [vmem:[#allocation8] sm:$0xf]
    %v184 = vld [vmem:[#allocation8 + $0x4] sm:$0xf]
    %v185 = vld [vmem:[#allocation8 + $0x8] sm:$0xf]
    %v186 = vld [vmem:[#allocation8 + $0xc] sm:$0xf]
    %v187 = vld [vmem:[#allocation8 + $0x10] sm:$0xf]
    %v188 = vld [vmem:[#allocation8 + $0x14] sm:$0xf]
    %v189 = vld [vmem:[#allocation8 + $0x18] sm:$0xf]
    %v190 = vld [vmem:[#allocation8 + $0x1c] sm:$0xf]
    %v191 = vld [vmem:[#allocation8 + $0x20] sm:$0xf]
    %v192 = vld [vmem:[#allocation8 + $0x24] sm:$0xf]
    %v193 = vld [vmem:[#allocation8 + $0x28] sm:$0xf]
    %v194 = vld [vmem:[#allocation8 + $0x2c] sm:$0xf]
    %v195 = vld [vmem:[#allocation8 + $0x30] sm:$0xf]
    %v196 = vld [vmem:[#allocation8 + $0x34] sm:$0xf]
    %v197 = vld [vmem:[#allocation8 + $0x38] sm:$0xf]
    %v198 = vld [vmem:[#allocation8 + $0x3c] sm:$0xf]
    %v199 = vld [vmem:[%s84] sm:$0x1]
    %v201 = vperm.slane %v199, 0
    %v205 = vunpack.c.l.b16 %v181
    %v206 = vunpack.c.l.b16 %v182
    %v207 = vpack.c.b16 %v206, %v205
    %v225 = vunpack.c.l.b16 %v183
    %v226 = vunpack.c.l.b16 %v184
    %v227 = vunpack.c.l.b16 %v185
    %v228 = vunpack.c.l.b16 %v186
    %v229 = vunpack.c.l.b16 %v187
    %v230 = vunpack.c.l.b16 %v188
    %v231 = vunpack.c.l.b16 %v189
    %v232 = vunpack.c.l.b16 %v190
    %v233 = vunpack.c.l.b16 %v191
    %v234 = vunpack.c.l.b16 %v192
    %v235 = vunpack.c.l.b16 %v193
    %v236 = vunpack.c.l.b16 %v194
    %v237 = vunpack.c.l.b16 %v195
    %v238 = vunpack.c.l.b16 %v196
    %v239 = vunpack.c.l.b16 %v197
    %v240 = vunpack.c.l.b16 %v198
    %v241 = vpack.c.b16 %v226, %v225
    %v242 = vpack.c.b16 %v228, %v227
    %v243 = vpack.c.b16 %v230, %v229
    %v244 = vpack.c.b16 %v232, %v231
    %v245 = vpack.c.b16 %v234, %v233
    %v246 = vpack.c.b16 %v236, %v235
    %v247 = vpack.c.b16 %v238, %v237
    %v248 = vpack.c.b16 %v240, %v239
    %257 = vmatpush.bf16.msra.mxu0 %v248
    %258 = vmatpush.bf16.msra.mxu0 %v247
    %259 = vmatpush.bf16.msra.mxu0 %v246
    %260 = vmatpush.bf16.msra.mxu0 %v245
    %261 = vmatpush.bf16.msra.mxu0 %v244
    %262 = vmatpush.bf16.msra.mxu0 %v243
    %263 = vmatpush.bf16.msra.mxu0 %v242
    %264 = vmatpush.bf16.msra.mxu0 %v241
    %265 = vmatmul.bf16.gmra.mxu0 %v207
    %v266 = vpop.f32.mrf.mxu0
    %v267 = vadd.f32 %v201, %v266
    %v268 = vpop.f32.mrf.mxu0
    %v269 = vadd.f32 %v201, %v268
    %270 = vdwg.mxu0
    %271 = vst [vmem:[#allocation9] sm:$0xff] %v267
    %272 = vst [vmem:[#allocation9 + $0x8] sm:$0xff] %v269
    // Predicated region
    $region38: #{tpu_custom_call.1} parent=1 // pred_check
      _
    $region39: #{tpu_custom_call.1} parent=1 // pred_check_branch
      %274 = sbr.rel (0) target = $region41
    $region40: #{tpu_custom_call.1} parent=1 // pred_region
      %s275 = sadd.s32 0, 0
      %277 = vsyncadd [#allocation5], 0
      %s278 = smul.addr %s275, 8
      %s279 = scalar_lea.hbm %s5, %s278
      %s280 = sshll.u32 [#allocation9], 4
      %s281 = int_to_ptr.vmem [resolvable:$true] %s280
      %s282 = sshll.u32 %s279, 4
      %s283 = int_to_ptr.hbm [resolvable:$true] %s282
      %288 = dma.vmem_to_hbm [thread:$0]  %s281, 256, %s283, [#allocation5], 128, 128, 8
    $region41: #{tpu_custom_call.1} parent=1 // pred_fallthru
      _
    // Predicated region
    $region42: #{tpu_custom_call.1} parent=1 // pred_check
      _
    $region43: #{tpu_custom_call.1} parent=1 // pred_check_branch
      %290 = sbr.rel (0) target = $region45
    $region44: #{tpu_custom_call.1} parent=1 // pred_region
      %292 = dma.done [#allocation5], 256
    $region45: #{tpu_custom_call.1} parent=1 // pred_fallthru
      _
    %293 = vsyncpa [#allocation4], 1
    %294 = vsyncpa [#allocation7], 1
    %295 = vsyncpa [#allocation5], 1

</llo_original>
